<compile_context>
chip_gen: v7x
topology: tpu7x:2x2x1
jax: 0.10.0
libtpu: 0.0.40
codegen_flags: <defaults>
</compile_context>

<pallas_src>
import functools
import math

import numpy as np
import jax
import jax.numpy as jnp
from jax.experimental import pallas as pl
from jax.experimental.pallas import tpu as pltpu


def _roll_list(lst, off):
    off = off % len(lst)
    if off == 0:
        return list(lst)
    return lst[-off:] + lst[:-off]


def _round_up(x, m):
    return ((x + m - 1) // m) * m


# ----------------------------------------------------------------------------
# Pallas kernel (training path)
# ----------------------------------------------------------------------------
def _train_mask_kernel(idx_ref, a_ref, out_ref, *, nvar):
    # idx_ref: (TB, P_pad) int32   mask_index (padded rows/cols are -1)
    # a_ref:   (V, P_pad, L_pad) bf16   per-variant complement table (1 - mask)
    # out_ref: (TB, L_pad) f32     already-complemented mask
    idx = idx_ref[...]
    # Per-variant one-hot x table matmul; static small loop (V = s1*s2),
    # bf16 MXU operands, f32 accumulation.  No modulo, no reshape.
    acc = jnp.dot((idx == 0).astype(jnp.bfloat16), a_ref[0],
                  preferred_element_type=jnp.float32)
    for v in range(1, nvar):
        acc = acc + jnp.dot((idx == v).astype(jnp.bfloat16), a_ref[v],
                            preferred_element_type=jnp.float32)
    out_ref[...] = acc


# ----------------------------------------------------------------------------
# Module
# ----------------------------------------------------------------------------
class CellRunningMaskAgentMultiCell:
    def __init__(self, num_input_frames, cell_shape, patch_num, mask_num,
                 spatial_repeat=False, temporal_shuffle=False,
                 test_temporal_shuffle=False, tile_b=256):
        self.patch_num = patch_num
        self.mask_num = mask_num
        self.mask_shape = [num_input_frames // 2, 14, 14]
        self.mask_stride = list(cell_shape)
        s0, s1, s2 = self.mask_stride
        # The reference PyTorch code implicitly requires s0 == 1 (train_mask
        # row assignment lengths only match then).
        assert s0 == 1
        T, H, W = self.mask_shape
        t_blk, h_blk, w_blk = T // s0, H // s1, W // s2
        cell = s0 * s1 * s2
        self.spatial_small_patch_num = h_blk * w_blk
        self.spatial_repeat = spatial_repeat
        self.temporal_shuffle = temporal_shuffle
        self.test_temporal_shuffle = test_temporal_shuffle
        self._tile_b = tile_b

        # ----- build mask_list exactly as the torch __init__ -----
        mask_per_patch = math.ceil(mask_num / (t_blk * h_blk * w_blk))
        vis_per_patch = cell - mask_per_patch
        if mask_per_patch <= vis_per_patch:
            stride = math.ceil(cell / mask_per_patch)
            mask_list = [0] * cell
            for i in range(mask_per_patch):
                mask_list[i * stride] = 1
        else:
            stride = math.ceil(cell / vis_per_patch)
            mask_list = [1] * cell
            for i in range(vis_per_patch):
                mask_list[i * stride] = 0
        assert sum(mask_list) == mask_per_patch

        # ----- test_mask (deterministic running mask) -----
        tm = np.zeros((t_blk, h_blk * w_blk, cell), np.float32)
        for t in range(t_blk):
            tm[t, :, :] = np.asarray(_roll_list(mask_list, t % cell),
                                     np.float32)[None, :]
        test_mask = tm.reshape(t_blk, h_blk, w_blk, s0, s1, s2)
        test_mask = test_mask.transpose(0, 3, 1, 4, 2, 5).reshape(T, H, W)
        self.test_mask = jnp.asarray(test_mask)
        # Precomputed complement for the eval path (no Pallas call needed).
        self._test_mask_inv_flat = jnp.asarray(
            (1.0 - test_mask).reshape(1, -1).astype(np.float32))

        # ----- train_mask: (s1*s2 variants, T, s1*s2) -----
        nvar = s1 * s2
        variants = []
        for i in range(nvar):
            v = np.zeros((T, nvar), np.float32)
            for t in range(T):
                v[t, :] = np.asarray(_roll_list(mask_list, (t + i) % nvar),
                                     np.float32)
            variants.append(v)
        train_mask = np.stack(variants, axis=0)
        self.train_mask = jnp.asarray(train_mask)
        self.nvar = nvar

        # ----- complement scatter table A: gather+permute+rearrange+(1-) -----
        L = T * H * W
        P = h_blk * w_blk
        self._l = L
        self._p = P
        self._l_pad = _round_up(L, 128)   # lane-dense output (784 -> 896)
        self._p_pad = _round_up(P, 8)     # sublane-aligned contraction dim
        A = np.zeros((nvar, self._p_pad, self._l_pad), np.float32)
        for p in range(P):
            hh, ww = p // w_blk, p % w_blk
            for v in range(nvar):
                for c in range(s1 * s2):
                    i1, i2 = c // s2, c % s2
                    for t in range(T):
                        o = t * (H * W) + (hh * s1 + i1) * W + (ww * s2 + i2)
                        A[v, p, o] = 1.0 - train_mask[v, t, c]
        # Values are exactly {0, 1} -> bf16 is lossless; halves HBM/VMEM DMA
        # and feeds the MXU in its native dtype.
        self.scatter_table = jnp.asarray(A, dtype=jnp.bfloat16)

        # predictor Linear(1024+256, patch_num): defined in the torch module
        # but never used in forward; initialize deterministically anyway.
        kw, _ = jax.random.split(jax.random.PRNGKey(42))
        self.predictor_w = jax.random.normal(kw, (1280, patch_num),
                                             jnp.float32) * 0.02
        self.predictor_b = jnp.zeros((patch_num,), jnp.float32)

    # ----- Pallas-backed mask construction (training) -----
    def _masks_from_indices(self, mask_index):
        B = mask_index.shape[0]
        P, P_pad, L, L_pad = self._p, self._p_pad, self._l, self._l_pad
        # Pad batch to a sublane multiple and patches to P_pad; fill with -1
        # so padded entries never match any variant (zero one-hot rows).
        B_pad = _round_up(B, 8)
        idx = jnp.full((B_pad, P_pad), -1, jnp.int32)
        idx = idx.at[:B, :P].set(mask_index.astype(jnp.int32))

        tb = min(self._tile_b, B_pad)          # batch tile (multiple of 8)
        grid = (pl.cdiv(B_pad, tb),)
        kernel = functools.partial(_train_mask_kernel, nvar=self.nvar)
        out = pl.pallas_call(
            kernel,
            out_shape=jax.ShapeDtypeStruct((B_pad, L_pad), jnp.float32),
            grid=grid,
            in_specs=[
                pl.BlockSpec((tb, P_pad), lambda i: (i, 0)),
                # constant index_map -> table stays VMEM-resident across tiles
                pl.BlockSpec((self.nvar, P_pad, L_pad), lambda i: (0, 0, 0)),
            ],
            out_specs=pl.BlockSpec((tb, L_pad), lambda i: (i, 0)),
            compiler_params=pltpu.CompilerParams(
                dimension_semantics=("parallel",)),
        )(idx, self.scatter_table)
        return out[:B, :L]

    def __call__(self, x, mask_shape, key=None, training=True):
        if isinstance(x, dict):
            x = x['video']
        B = x.shape[0]
        if training:
            assert key is not None
            k_idx, k_logits = jax.random.split(key)
            if self.spatial_repeat:
                mi = jax.random.randint(k_idx, (B, 1), 0, self.nvar)
                mi = jnp.broadcast_to(mi, (B, self.spatial_small_patch_num))
            else:
                mi = jax.random.randint(
                    k_idx, (B, self.spatial_small_patch_num), 0, self.nvar)
            mask = self._masks_from_indices(mi)
            # TODO(synk): temporal_shuffle (rand-argsort gather over time) not
            # implemented; default config has it disabled.
            L = mask.shape[1]
            seq_logits = jax.random.uniform(k_logits, (B, L), jnp.float32)
            # TODO(synk): top_k has no Pallas TPU primitive; done in plain JAX.
            _, indices = jax.lax.top_k(seq_logits, self.mask_num)
            # NOTE(perf review): downstream should index seq_logits directly
            # instead of materializing this (B, mask_num, L) broadcast; kept
            # here only to preserve the reference module's output contract.
            seq_logits_rep = jnp.broadcast_to(
                seq_logits[:, None, :], (B, self.mask_num, L))
            return {'seq_logits': seq_logits_rep,
                    'indices': indices,
                    'mask': mask}
        else:
            # TODO(synk): test_temporal_shuffle not implemented; default False.
            # Eval path: precomputed complement + broadcast (no Pallas call —
            # launch overhead would exceed the 6 KB of work).
            return {'mask': jnp.broadcast_to(self._test_mask_inv_flat,
                                             (B, self._l))}


# ----------------------------------------------------------------------------
# Demo / verification
# ----------------------------------------------------------------------------
if __name__ == "__main__":
    key = jax.random.PRNGKey(0)
    kx, kfwd = jax.random.split(key)

    # Small shapes: NUM_INPUT_FRAMES=8 -> mask volume (4, 14, 14);
    # CELL_SHAPE=[1,2,2]; mask ratio 0.75 -> mask_num = 588; patch_num = 196.
    agent = CellRunningMaskAgentMultiCell(
        num_input_frames=8, cell_shape=(1, 2, 2), patch_num=196, mask_num=588)

    B = 2
    x = jax.random.normal(kx, (B, 3, 8, 16, 16), jnp.float32)

    out_train = agent(x, mask_shape=agent.mask_shape, key=kfwd, training=True)
    out_eval = agent(x, mask_shape=agent.mask_shape, training=False)
    jax.block_until_ready(out_train)
    jax.block_until_ready(out_eval)

    # ---- reference (plain numpy) check of the Pallas-produced masks ----
    T, H, W = agent.mask_shape
    s0, s1, s2 = agent.mask_stride
    hb, wb = H // s1, W // s2

    k_idx, _ = jax.random.split(kfwd)
    mi_ref = np.asarray(jax.random.randint(
        k_idx, (B, agent.spatial_small_patch_num), 0, agent.nvar))
    tm = np.asarray(agent.train_mask)
    sel = tm[mi_ref.reshape(-1)].reshape(B, hb * wb, T, s1 * s2)
    sel = sel.transpose(0, 2, 1, 3)                                   # b t p c
    sel = sel.reshape(B, T, hb, wb, s0, s1, s2)
    sel = sel.transpose(0, 1, 4, 2, 5, 3, 6).reshape(B, T, H, W)
    ref_train = 1.0 - sel.reshape(B, -1)
    np.testing.assert_allclose(np.asarray(out_train['mask']), ref_train,
                               atol=1e-6)

    ref_eval = 1.0 - np.tile(np.asarray(agent.test_mask).reshape(1, -1),
                             (B, 1))
    np.testing.assert_allclose(np.asarray(out_eval['mask']), ref_eval,
                               atol=1e-6)

    assert out_train['indices'].shape == (B, agent.mask_num)
    assert out_train['seq_logits'].shape == (B, agent.mask_num, T * H * W)

    print("KERNEL_OK")
</pallas_src>

<mosaic_0001>
module attributes {stable_mosaic.version = 11 : i64} {
  func.func @_train_mask_kernel(%arg0: i32, %arg1: memref<8x56xi32, #tpu.memory_space<vmem>>, %arg2: memref<4x56x896xbf16, #tpu.memory_space<vmem>>, %arg3: memref<8x896xf32, #tpu.memory_space<vmem>>) attributes {dimension_semantics = [#tpu.dimension_semantics<parallel>], iteration_bounds = array<i64: 1>, scalar_prefetch = 0 : i64, scratch_operands = 0 : i64, tpu.core_type = #tpu.core_type<tc>, window_params = [{transform_indices = @transform_0, window_bounds = array<i64: 8, 56>}, {pipeline_mode = #tpu.pipeline_mode<synchronous>, transform_indices = @transform_1, window_bounds = array<i64: 4, 56, 896>}, {transform_indices = @transform_2, window_bounds = array<i64: 8, 896>}]} {
    %c0 = arith.constant 0 : index
    %c0_0 = arith.constant 0 : index
    %0 = vector.load %arg1[%c0, %c0_0] : memref<8x56xi32, #tpu.memory_space<vmem>>, vector<8x56xi32>
    %c0_i32 = arith.constant 0 : i32
    %1 = vector.broadcast %c0_i32 : i32 to vector<8x56xi32>
    %2 = arith.cmpi eq, %0, %1 : vector<8x56xi32>
    %3 = arith.extui %2 : vector<8x56xi1> to vector<8x56xi32>
    %4 = arith.sitofp %3 : vector<8x56xi32> to vector<8x56xf32>
    %5 = arith.truncf %4 : vector<8x56xf32> to vector<8x56xbf16>
    %c0_1 = arith.constant 0 : index
    %c0_2 = arith.constant 0 : index
    %c0_3 = arith.constant 0 : index
    %6 = vector.load %arg2[%c0_1, %c0_2, %c0_3] : memref<4x56x896xbf16, #tpu.memory_space<vmem>>, vector<1x56x896xbf16>
    %7 = vector.shape_cast %6 : vector<1x56x896xbf16> to vector<56x896xbf16>
    %cst = arith.constant dense<0.000000e+00> : vector<8x896xf32>
    %8 = tpu.matmul %5, %7, %cst {dimension_numbers = #tpu.dot_dimension_numbers<[1], [0], [0], [1], [0, 0, 1, 1], [], []>} : vector<8x56xbf16>, vector<56x896xbf16>, vector<8x896xf32> -> vector<8x896xf32>
    %c1_i32 = arith.constant 1 : i32
    %9 = vector.broadcast %c1_i32 : i32 to vector<8x56xi32>
    %10 = arith.cmpi eq, %0, %9 : vector<8x56xi32>
    %11 = arith.extui %10 : vector<8x56xi1> to vector<8x56xi32>
    %12 = arith.sitofp %11 : vector<8x56xi32> to vector<8x56xf32>
    %13 = arith.truncf %12 : vector<8x56xf32> to vector<8x56xbf16>
    %c1 = arith.constant 1 : index
    %c0_4 = arith.constant 0 : index
    %c0_5 = arith.constant 0 : index
    %14 = vector.load %arg2[%c1, %c0_4, %c0_5] : memref<4x56x896xbf16, #tpu.memory_space<vmem>>, vector<1x56x896xbf16>
    %15 = vector.shape_cast %14 : vector<1x56x896xbf16> to vector<56x896xbf16>
    %cst_6 = arith.constant dense<0.000000e+00> : vector<8x896xf32>
    %16 = tpu.matmul %13, %15, %cst_6 {dimension_numbers = #tpu.dot_dimension_numbers<[1], [0], [0], [1], [0, 0, 1, 1], [], []>} : vector<8x56xbf16>, vector<56x896xbf16>, vector<8x896xf32> -> vector<8x896xf32>
    %17 = arith.addf %8, %16 : vector<8x896xf32>
    %c2_i32 = arith.constant 2 : i32
    %18 = vector.broadcast %c2_i32 : i32 to vector<8x56xi32>
    %19 = arith.cmpi eq, %0, %18 : vector<8x56xi32>
    %20 = arith.extui %19 : vector<8x56xi1> to vector<8x56xi32>
    %21 = arith.sitofp %20 : vector<8x56xi32> to vector<8x56xf32>
    %22 = arith.truncf %21 : vector<8x56xf32> to vector<8x56xbf16>
    %c2 = arith.constant 2 : index
    %c0_7 = arith.constant 0 : index
    %c0_8 = arith.constant 0 : index
    %23 = vector.load %arg2[%c2, %c0_7, %c0_8] : memref<4x56x896xbf16, #tpu.memory_space<vmem>>, vector<1x56x896xbf16>
    %24 = vector.shape_cast %23 : vector<1x56x896xbf16> to vector<56x896xbf16>
    %cst_9 = arith.constant dense<0.000000e+00> : vector<8x896xf32>
    %25 = tpu.matmul %22, %24, %cst_9 {dimension_numbers = #tpu.dot_dimension_numbers<[1], [0], [0], [1], [0, 0, 1, 1], [], []>} : vector<8x56xbf16>, vector<56x896xbf16>, vector<8x896xf32> -> vector<8x896xf32>
    %26 = arith.addf %17, %25 : vector<8x896xf32>
    %c3_i32 = arith.constant 3 : i32
    %27 = vector.broadcast %c3_i32 : i32 to vector<8x56xi32>
    %28 = arith.cmpi eq, %0, %27 : vector<8x56xi32>
    %29 = arith.extui %28 : vector<8x56xi1> to vector<8x56xi32>
    %30 = arith.sitofp %29 : vector<8x56xi32> to vector<8x56xf32>
    %31 = arith.truncf %30 : vector<8x56xf32> to vector<8x56xbf16>
    %c3 = arith.constant 3 : index
    %c0_10 = arith.constant 0 : index
    %c0_11 = arith.constant 0 : index
    %32 = vector.load %arg2[%c3, %c0_10, %c0_11] : memref<4x56x896xbf16, #tpu.memory_space<vmem>>, vector<1x56x896xbf16>
    %33 = vector.shape_cast %32 : vector<1x56x896xbf16> to vector<56x896xbf16>
    %cst_12 = arith.constant dense<0.000000e+00> : vector<8x896xf32>
    %34 = tpu.matmul %31, %33, %cst_12 {dimension_numbers = #tpu.dot_dimension_numbers<[1], [0], [0], [1], [0, 0, 1, 1], [], []>} : vector<8x56xbf16>, vector<56x896xbf16>, vector<8x896xf32> -> vector<8x896xf32>
    %35 = arith.addf %26, %34 : vector<8x896xf32>
    %c0_13 = arith.constant 0 : index
    %c0_14 = arith.constant 0 : index
    %36 = vector.load %arg3[%c0_13, %c0_14] : memref<8x896xf32, #tpu.memory_space<vmem>>, vector<8x896xf32>
    tpu.vector_store %arg3[%c0_13, %c0_14], %35 {strides = array<i32>} : memref<8x896xf32, #tpu.memory_space<vmem>>, vector<8x896xf32>,
    return
  }
  func.func @transform_0(%arg0: i32) -> (i32, i32) {
    %c0_i32 = arith.constant 0 : i32
    %c0_i32_0 = arith.constant 0 : i32
    return %arg0, %c0_i32 : i32, i32
  }
  func.func @transform_1(%arg0: i32) -> (i32, i32, i32) {
    %c0_i32 = arith.constant 0 : i32
    %c0_i32_0 = arith.constant 0 : i32
    %c0_i32_1 = arith.constant 0 : i32
    %c0_i32_2 = arith.constant 0 : i32
    return %c0_i32, %c0_i32_0, %c0_i32_1 : i32, i32, i32
  }
  func.func @transform_2(%arg0: i32) -> (i32, i32) {
    %c0_i32 = arith.constant 0 : i32
    %c0_i32_0 = arith.constant 0 : i32
    return %arg0, %c0_i32 : i32, i32
  }
}

</mosaic_0001>

<llo_original>
// kernel: tpu_custom_call.1
$region0: #{tpu_custom_call.1}
  #allocation0 [shape = 'u32[]', space=smem, size = 0x4, offset = 0x4, fixed_abs, tag = 'smem constant byte address 0x4 - core index']
  #allocation1 [shape = 'u32[144,128]{1,0:T(1,128)}', space=vmem, size = 0x12000, scoped, tag = 'internal scratch']
  %s0 = inlined_call_operand.hbm [shape: s32[8,56], index: 0, kind: input, shape index: {}]
  %s1 = inlined_call_operand.hbm [shape: bf16[4,56,896], index: 1, kind: input, shape index: {}]
  %s2 = inlined_call_operand.hbm [shape: f32[8,896], index: 2, kind: output, shape index: {}]
  %s3 = sld [smem:[#allocation0]]
  $region26: #{tpu_custom_call.1} parent=0
    _
  %s5 = ssub.s32 1, %s3
  %s6 = scalar_select 0, %s5, %s3
  $region1: #{tpu_custom_call.1} parent=0
    #allocation2 [shape = 'u8[4096]{0}', space=vmem, size = 0x1000, scoped, tag = 'input window, operand 0, single buffered']
    #allocation3 [shape = 's32[1]{0}', space=sflag, size = 0x4, scoped, tag = 'scoped memory for tpu_custom_call.1']
    #allocation4 [shape = 's32[1]{0}', space=sflag, size = 0x4, scoped, tag = 'scoped memory for tpu_custom_call.1']
    #allocation5 [shape = 'u8[401408]{0}', space=vmem, size = 0x62000, scoped, tag = 'input window, operand 1, single buffered']
    #allocation6 [shape = 's32[1]{0}', space=sflag, size = 0x4, scoped, tag = 'scoped memory for tpu_custom_call.1']
    #allocation7 [shape = 'u8[28672]{0}', space=vmem, size = 0x7000, scoped, tag = 'output window, operand 0, single buffered']
    %7 = vsyncpa [#allocation3], 0
    %8 = vsyncpa [#allocation6], 0
    %9 = vsyncpa [#allocation4], 0
    // Predicated region
    $region2: #{tpu_custom_call.1} parent=1 // pred_check
      _
    $region3: #{tpu_custom_call.1} parent=1 // pred_check_branch
      %11 = sbr.rel (0) target = $region5
    $region4: #{tpu_custom_call.1} parent=1 // pred_region
      %s13 = ssub.s32 128, 128
      %14 = vsyncadd [#allocation3], %s13
      %s16 = sshll.u32 [#allocation2], 4
      %s17 = int_to_ptr.vmem [resolvable:$true] %s16
      %19 = dma.hbm_to_vmem [thread:$0]  %s0, 128, %s17, [#allocation3]
    $region5: #{tpu_custom_call.1} parent=1 // pred_fallthru
      _
    // Predicated region
    $region6: #{tpu_custom_call.1} parent=1 // pred_check
      _
    $region7: #{tpu_custom_call.1} parent=1 // pred_check_branch
      %21 = sbr.rel (0) target = $region9
    $region8: #{tpu_custom_call.1} parent=1 // pred_region
      %s23 = ssub.s32 12544, 12544
      %24 = vsyncadd [#allocation6], %s23
      %s25 = sshll.u32 [#allocation5], 4
      %s26 = int_to_ptr.vmem [resolvable:$true] %s25
      %31 = dma.hbm_to_vmem [thread:$0]  %s1, 12544, %s26, [#allocation6], 448, 448, 28
    $region9: #{tpu_custom_call.1} parent=1 // pred_fallthru
      _
    // Predicated region
    $region10: #{tpu_custom_call.1} parent=1 // pred_check
      _
    $region11: #{tpu_custom_call.1} parent=1 // pred_check_branch
      %33 = sbr.rel (0) target = $region13
    $region12: #{tpu_custom_call.1} parent=1 // pred_region
      %34 = dma.done [#allocation3], 128
    $region13: #{tpu_custom_call.1} parent=1 // pred_fallthru
      _
    // Predicated region
    $region14: #{tpu_custom_call.1} parent=1 // pred_check
      _
    $region15: #{tpu_custom_call.1} parent=1 // pred_check_branch
      %36 = sbr.rel (0) target = $region17
    $region16: #{tpu_custom_call.1} parent=1 // pred_region
      %37 = dma.done [#allocation6], 12544
    $region17: #{tpu_custom_call.1} parent=1 // pred_fallthru
      _
    %v39 = vld [vmem:[#allocation2] sm:$0xff]
    %vm40 = vcmp.eq.s32.totalorder %v39, 0
    %v41 = vsel %vm40, 1, 0
    %v42 = vcvt.s32.f32 %v41
    %v43 = vpack.c.bf16 %v42, %v42
    %v44 = vld [vmem:[#allocation5] sm:$0xff]
    %v45 = vld [vmem:[#allocation5 + $0x8] sm:$0xff]
    %v46 = vld [vmem:[#allocation5 + $0x10] sm:$0xff]
    %v47 = vld [vmem:[#allocation5 + $0x18] sm:$0xf]
    %v48 = vld [vmem:[#allocation5 + $0x1c] sm:$0xff]
    %v49 = vld [vmem:[#allocation5 + $0x24] sm:$0xff]
    %v50 = vld [vmem:[#allocation5 + $0x2c] sm:$0xff]
    %v51 = vld [vmem:[#allocation5 + $0x34] sm:$0xf]
    %v52 = vld [vmem:[#allocation5 + $0x38] sm:$0xff]
    %v53 = vld [vmem:[#allocation5 + $0x40] sm:$0xff]
    %v54 = vld [vmem:[#allocation5 + $0x48] sm:$0xff]
    %v55 = vld [vmem:[#allocation5 + $0x50] sm:$0xf]
    %v56 = vld [vmem:[#allocation5 + $0x54] sm:$0xff]
    %v57 = vld [vmem:[#allocation5 + $0x5c] sm:$0xff]
    %v58 = vld [vmem:[#allocation5 + $0x64] sm:$0xff]
    %v59 = vld [vmem:[#allocation5 + $0x6c] sm:$0xf]
    %v60 = vld [vmem:[#allocation5 + $0x70] sm:$0xff]
    %v61 = vld [vmem:[#allocation5 + $0x78] sm:$0xff]
    %v62 = vld [vmem:[#allocation5 + $0x80] sm:$0xff]
    %v63 = vld [vmem:[#allocation5 + $0x88] sm:$0xf]
    %v64 = vld [vmem:[#allocation5 + $0x8c] sm:$0xff]
    %v65 = vld [vmem:[#allocation5 + $0x94] sm:$0xff]
    %v66 = vld [vmem:[#allocation5 + $0x9c] sm:$0xff]
    %v67 = vld [vmem:[#allocation5 + $0xa4] sm:$0xf]
    %v68 = vld [vmem:[#allocation5 + $0xa8] sm:$0xff]
    %v69 = vld [vmem:[#allocation5 + $0xb0] sm:$0xff]
    %v70 = vld [vmem:[#allocation5 + $0xb8] sm:$0xff]
    %v71 = vld [vmem:[#allocation5 + $0xc0] sm:$0xf]
    %vm72 = vcmp.eq.s32.totalorder %v39, 1
    %v73 = vsel %vm72, 1, 0
    %v74 = vcvt.s32.f32 %v73
    %v75 = vpack.c.bf16 %v74, %v74
    %s76 = scalar_lea.vmem [#allocation5], 196
    %v77 = vld [vmem:[%s76] sm:$0xff]
    %v78 = vld [vmem:[%s76 + $0x8] sm:$0xff]
    %v79 = vld [vmem:[%s76 + $0x10] sm:$0xff]
    %v80 = vld [vmem:[%s76 + $0x18] sm:$0xf]
    %v81 = vld [vmem:[%s76 + $0x1c] sm:$0xff]
    %v82 = vld [vmem:[%s76 + $0x24] sm:$0xff]
    %v83 = vld [vmem:[%s76 + $0x2c] sm:$0xff]
    %v84 = vld [vmem:[%s76 + $0x34] sm:$0xf]
    %v85 = vld [vmem:[%s76 + $0x38] sm:$0xff]
    %v86 = vld [vmem:[%s76 + $0x40] sm:$0xff]
    %v87 = vld [vmem:[%s76 + $0x48] sm:$0xff]
    %v88 = vld [vmem:[%s76 + $0x50] sm:$0xf]
    %v89 = vld [vmem:[%s76 + $0x54] sm:$0xff]
    %v90 = vld [vmem:[%s76 + $0x5c] sm:$0xff]
    %v91 = vld [vmem:[%s76 + $0x64] sm:$0xff]
    %v92 = vld [vmem:[%s76 + $0x6c] sm:$0xf]
    %v93 = vld [vmem:[%s76 + $0x70] sm:$0xff]
    %v94 = vld [vmem:[%s76 + $0x78] sm:$0xff]
    %v95 = vld [vmem:[%s76 + $0x80] sm:$0xff]
    %v96 = vld [vmem:[%s76 + $0x88] sm:$0xf]
    %v97 = vld [vmem:[%s76 + $0x8c] sm:$0xff]
    %v98 = vld [vmem:[%s76 + $0x94] sm:$0xff]
    %v99 = vld [vmem:[%s76 + $0x9c] sm:$0xff]
    %v100 = vld [vmem:[%s76 + $0xa4] sm:$0xf]
    %v101 = vld [vmem:[%s76 + $0xa8] sm:$0xff]
    %v102 = vld [vmem:[%s76 + $0xb0] sm:$0xff]
    %v103 = vld [vmem:[%s76 + $0xb8] sm:$0xff]
    %v104 = vld [vmem:[%s76 + $0xc0] sm:$0xf]
    %v133 = vunpack.c.l.b16 %v77
    %v134 = vunpack.c.h.b16 %v77
    %v135 = vunpack.c.l.b16 %v78
    %v136 = vunpack.c.h.b16 %v78
    %v137 = vunpack.c.l.b16 %v79
    %v138 = vunpack.c.h.b16 %v79
    %v139 = vunpack.c.l.b16 %v80
    %v140 = vunpack.c.l.b16 %v81
    %v141 = vunpack.c.h.b16 %v81
    %v142 = vunpack.c.l.b16 %v82
    %v143 = vunpack.c.h.b16 %v82
    %v144 = vunpack.c.l.b16 %v83
    %v145 = vunpack.c.h.b16 %v83
    %v146 = vunpack.c.l.b16 %v84
    %v147 = vunpack.c.l.b16 %v85
    %v148 = vunpack.c.h.b16 %v85
    %v149 = vunpack.c.l.b16 %v86
    %v150 = vunpack.c.h.b16 %v86
    %v151 = vunpack.c.l.b16 %v87
    %v152 = vunpack.c.h.b16 %v87
    %v153 = vunpack.c.l.b16 %v88
    %v154 = vunpack.c.l.b16 %v89
    %v155 = vunpack.c.h.b16 %v89
    %v156 = vunpack.c.l.b16 %v90
    %v157 = vunpack.c.h.b16 %v90
    %v158 = vunpack.c.l.b16 %v91
    %v159 = vunpack.c.h.b16 %v91
    %v160 = vunpack.c.l.b16 %v92
    %v161 = vunpack.c.l.b16 %v93
    %v162 = vunpack.c.h.b16 %v93
    %v163 = vunpack.c.l.b16 %v94
    %v164 = vunpack.c.h.b16 %v94
    %v165 = vunpack.c.l.b16 %v95
    %v166 = vunpack.c.h.b16 %v95
    %v167 = vunpack.c.l.b16 %v96
    %v168 = vunpack.c.l.b16 %v97
    %v169 = vunpack.c.h.b16 %v97
    %v170 = vunpack.c.l.b16 %v98
    %v171 = vunpack.c.h.b16 %v98
    %v172 = vunpack.c.l.b16 %v99
    %v173 = vunpack.c.h.b16 %v99
    %v174 = vunpack.c.l.b16 %v100
    %v175 = vunpack.c.l.b16 %v101
    %v176 = vunpack.c.h.b16 %v101
    %v177 = vunpack.c.l.b16 %v102
    %v178 = vunpack.c.h.b16 %v102
    %v179 = vunpack.c.l.b16 %v103
    %v180 = vunpack.c.h.b16 %v103
    %v181 = vunpack.c.l.b16 %v104
    %v182 = vpack.c.b16 %v140, %v133
    %v183 = vpack.c.b16 %v141, %v134
    %v184 = vpack.c.b16 %v142, %v135
    %v185 = vpack.c.b16 %v143, %v136
    %v186 = vpack.c.b16 %v144, %v137
    %v187 = vpack.c.b16 %v145, %v138
    %v188 = vpack.c.b16 %v146, %v139
    %v189 = vpack.c.b16 %v154, %v147
    %v190 = vpack.c.b16 %v155, %v148
    %v191 = vpack.c.b16 %v156, %v149
    %v192 = vpack.c.b16 %v157, %v150
    %v193 = vpack.c.b16 %v158, %v151
    %v194 = vpack.c.b16 %v159, %v152
    %v195 = vpack.c.b16 %v160, %v153
    %v196 = vpack.c.b16 %v168, %v161
    %v197 = vpack.c.b16 %v169, %v162
    %v198 = vpack.c.b16 %v170, %v163
    %v199 = vpack.c.b16 %v171, %v164
    %v200 = vpack.c.b16 %v172, %v165
    %v201 = vpack.c.b16 %v173, %v166
    %v202 = vpack.c.b16 %v174, %v167
    %v203 = vpack.c.b16 %v175, %v175
    %v204 = vpack.c.b16 %v176, %v176
    %v205 = vpack.c.b16 %v177, %v177
    %v206 = vpack.c.b16 %v178, %v178
    %v207 = vpack.c.b16 %v179, %v179
    %v208 = vpack.c.b16 %v180, %v180
    %v209 = vpack.c.b16 %v181, %v181
    %vm231 = vcmask 457728
    %v233 = vsel %vm231, %v75, 0
    %vm235 = vcmask 1043456
    %v237 = vsel %vm235, %v203, 0
    %v240 = vsel %vm235, %v204, 0
    %v243 = vsel %vm235, %v205, 0
    %v246 = vsel %vm235, %v206, 0
    %v249 = vsel %vm235, %v207, 0
    %v252 = vsel %vm235, %v208, 0
    %v255 = vsel %vm235, %v209, 0
    %257 = vmatprep.subr.bf16.mxu0 %v183
    %258 = vmatpush1.bf16.msra.mxu0 %v182
    %259 = vmatprep.subr.bf16.mxu0 %v190
    %260 = vmatpush1.bf16.msra.mxu0 %v189
    %261 = vmatprep.subr.bf16.mxu0 %v197
    %262 = vmatpush1.bf16.msra.mxu0 %v196
    %263 = vmatprep.subr.bf16.mxu0 %v240
    %264 = vmatpush1.bf16.msra.mxu0 %v237
    %265 = vmatprep.subr.bf16.mxu0 0
    %266 = vmatpush1.bf16.msra.mxu0 0
    %267 = vmatprep.subr.bf16.mxu0 0
    %268 = vmatpush1.bf16.msra.mxu0 0
    %269 = vmatprep.subr.bf16.mxu0 0
    %270 = vmatpush1.bf16.msra.mxu0 0
    %271 = vmatprep.subr.bf16.mxu0 0
    %272 = vmatpush1.bf16.msra.mxu0 0
    %273 = vmatprep.subr.bf16.mxu0 0
    %274 = vmatpush1.bf16.msra.mxu0 0
    %275 = vmatprep.subr.bf16.mxu0 0
    %276 = vmatpush1.bf16.msra.mxu0 0
    %277 = vmatprep.subr.bf16.mxu0 0
    %278 = vmatpush1.bf16.msra.mxu0 0
    %279 = vmatprep.subr.bf16.mxu0 0
    %280 = vmatpush1.bf16.msra.mxu0 0
    %281 = vmatprep.subr.bf16.mxu0 0
    %282 = vmatpush1.bf16.msra.mxu0 0
    %283 = vmatprep.subr.bf16.mxu0 0
    %284 = vmatpush1.bf16.msra.mxu0 0
    %285 = vmatprep.subr.bf16.mxu0 0
    %286 = vmatpush1.bf16.msra.mxu0 0
    %287 = vmatprep.subr.bf16.mxu0 0
    %288 = vmatpush1.bf16.msra.mxu0 0
    %289 = vmatprep.mubr.bf16.mxu0 0
    %290 = vmatmul.mubr.bf16.gmra.mrb[0].mxu0 %v233
    %v291 = vpop.f32.mrb[0].mxu0
    %v292 = vadd.f32 0.0, %v291
    %v293 = vpop.f32.mrb[0].mxu0
    %v294 = vadd.f32 0.0, %v293
    %v295 = vpop.f32.mrb[0].mxu0
    %v296 = vpop.f32.mrb[0].mxu0
    %297 = vdwg.mxu0
    %298 = vmatprep.subr.bf16.mxu0 %v185
    %299 = vmatpush1.bf16.msra.mxu0 %v184
    %300 = vmatprep.subr.bf16.mxu0 %v192
    %301 = vmatpush1.bf16.msra.mxu0 %v191
    %302 = vmatprep.subr.bf16.mxu0 %v199
    %303 = vmatpush1.bf16.msra.mxu0 %v198
    %304 = vmatprep.subr.bf16.mxu0 %v246
    %305 = vmatpush1.bf16.msra.mxu0 %v243
    %306 = vmatprep.subr.bf16.mxu0 0
    %307 = vmatpush1.bf16.msra.mxu0 0
    %308 = vmatprep.subr.bf16.mxu0 0
    %309 = vmatpush1.bf16.msra.mxu0 0
    %310 = vmatprep.subr.bf16.mxu0 0
    %311 = vmatpush1.bf16.msra.mxu0 0
    %312 = vmatprep.subr.bf16.mxu0 0
    %313 = vmatpush1.bf16.msra.mxu0 0
    %314 = vmatprep.subr.bf16.mxu0 0
    %315 = vmatpush1.bf16.msra.mxu0 0
    %316 = vmatprep.subr.bf16.mxu0 0
    %317 = vmatpush1.bf16.msra.mxu0 0
    %318 = vmatprep.subr.bf16.mxu0 0
    %319 = vmatpush1.bf16.msra.mxu0 0
    %320 = vmatprep.subr.bf16.mxu0 0
    %321 = vmatpush1.bf16.msra.mxu0 0
    %322 = vmatprep.subr.bf16.mxu0 0
    %323 = vmatpush1.bf16.msra.mxu0 0
    %324 = vmatprep.subr.bf16.mxu0 0
    %325 = vmatpush1.bf16.msra.mxu0 0
    %326 = vmatprep.subr.bf16.mxu0 0
    %327 = vmatpush1.bf16.msra.mxu0 0
    %328 = vmatprep.subr.bf16.mxu0 0
    %329 = vmatpush1.bf16.msra.mxu0 0
    %330 = vmatprep.mubr.bf16.mxu0 0
    %331 = vmatmul.mubr.bf16.gmra.mrb[0].mxu0 %v233
    %v332 = vpop.f32.mrb[0].mxu0
    %v333 = vadd.f32 0.0, %v332
    %v334 = vpop.f32.mrb[0].mxu0
    %v335 = vadd.f32 0.0, %v334
    %v336 = vpop.f32.mrb[0].mxu0
    %v337 = vpop.f32.mrb[0].mxu0
    %338 = vdwg.mxu0
    %339 = vmatprep.subr.bf16.mxu0 %v187
    %340 = vmatpush1.bf16.msra.mxu0 %v186
    %341 = vmatprep.subr.bf16.mxu0 %v194
    %342 = vmatpush1.bf16.msra.mxu0 %v193
    %343 = vmatprep.subr.bf16.mxu0 %v201
    %344 = vmatpush1.bf16.msra.mxu0 %v200
    %345 = vmatprep.subr.bf16.mxu0 %v252
    %346 = vmatpush1.bf16.msra.mxu0 %v249
    %347 = vmatprep.subr.bf16.mxu0 0
    %348 = vmatpush1.bf16.msra.mxu0 0
    %349 = vmatprep.subr.bf16.mxu0 0
    %350 = vmatpush1.bf16.msra.mxu0 0
    %351 = vmatprep.subr.bf16.mxu0 0
    %352 = vmatpush1.bf16.msra.mxu0 0
    %353 = vmatprep.subr.bf16.mxu0 0
    %354 = vmatpush1.bf16.msra.mxu0 0
    %355 = vmatprep.subr.bf16.mxu0 0
    %356 = vmatpush1.bf16.msra.mxu0 0
    %357 = vmatprep.subr.bf16.mxu0 0
    %358 = vmatpush1.bf16.msra.mxu0 0
    %359 = vmatprep.subr.bf16.mxu0 0
    %360 = vmatpush1.bf16.msra.mxu0 0
    %361 = vmatprep.subr.bf16.mxu0 0
    %362 = vmatpush1.bf16.msra.mxu0 0
    %363 = vmatprep.subr.bf16.mxu0 0
    %364 = vmatpush1.bf16.msra.mxu0 0
    %365 = vmatprep.subr.bf16.mxu0 0
    %366 = vmatpush1.bf16.msra.mxu0 0
    %367 = vmatprep.subr.bf16.mxu0 0
    %368 = vmatpush1.bf16.msra.mxu0 0
    %369 = vmatprep.subr.bf16.mxu0 0
    %370 = vmatpush1.bf16.msra.mxu0 0
    %371 = vmatprep.mubr.bf16.mxu0 0
    %372 = vmatmul.mubr.bf16.gmra.mrb[0].mxu0 %v233
    %v373 = vpop.f32.mrb[0].mxu0
    %v374 = vadd.f32 0.0, %v373
    %v375 = vpop.f32.mrb[0].mxu0
    %v376 = vadd.f32 0.0, %v375
    %v377 = vpop.f32.mrb[0].mxu0
    %v378 = vpop.f32.mrb[0].mxu0
    %379 = vdwg.mxu0
    %380 = vmatprep.subr.bf16.mxu0 0
    %381 = vmatpush1.bf16.msra.mxu0 %v188
    %382 = vmatprep.subr.bf16.mxu0 0
    %383 = vmatpush1.bf16.msra.mxu0 %v195
    %384 = vmatprep.subr.bf16.mxu0 0
    %385 = vmatpush1.bf16.msra.mxu0 %v202
    %386 = vmatprep.subr.bf16.mxu0 0
    %387 = vmatpush1.bf16.msra.mxu0 %v255
    %388 = vmatprep.subr.bf16.mxu0 0
    %389 = vmatpush1.bf16.msra.mxu0 0
    %390 = vmatprep.subr.bf16.mxu0 0
    %391 = vmatpush1.bf16.msra.mxu0 0
    %392 = vmatprep.subr.bf16.mxu0 0
    %393 = vmatpush1.bf16.msra.mxu0 0
    %394 = vmatprep.subr.bf16.mxu0 0
    %395 = vmatpush1.bf16.msra.mxu0 0
    %396 = vmatprep.subr.bf16.mxu0 0
    %397 = vmatpush1.bf16.msra.mxu0 0
    %398 = vmatprep.subr.bf16.mxu0 0
    %399 = vmatpush1.bf16.msra.mxu0 0
    %400 = vmatprep.subr.bf16.mxu0 0
    %401 = vmatpush1.bf16.msra.mxu0 0
    %402 = vmatprep.subr.bf16.mxu0 0
    %403 = vmatpush1.bf16.msra.mxu0 0
    %404 = vmatprep.subr.bf16.mxu0 0
    %405 = vmatpush1.bf16.msra.mxu0 0
    %406 = vmatprep.subr.bf16.mxu0 0
    %407 = vmatpush1.bf16.msra.mxu0 0
    %408 = vmatprep.subr.bf16.mxu0 0
    %409 = vmatpush1.bf16.msra.mxu0 0
    %410 = vmatprep.subr.bf16.mxu0 0
    %411 = vmatpush1.bf16.msra.mxu0 0
    %412 = vmatprep.mubr.bf16.mxu0 0
    %413 = vmatmul.mubr.bf16.gmra.mrb[0].mxu0 %v233
    %v414 = vpop.f32.mrb[0].mxu0
    %v415 = vadd.f32 0.0, %v414
    %v416 = vpop.f32.mrb[0].mxu0
    %v417 = vpop.f32.mrb[0].mxu0
    %v418 = vpop.f32.mrb[0].mxu0
    %419 = vdwg.mxu0
    %v448 = vunpack.c.l.b16 %v44
    %v449 = vunpack.c.h.b16 %v44
    %v450 = vunpack.c.l.b16 %v45
    %v451 = vunpack.c.h.b16 %v45
    %v452 = vunpack.c.l.b16 %v46
    %v453 = vunpack.c.h.b16 %v46
    %v454 = vunpack.c.l.b16 %v47
    %v455 = vunpack.c.l.b16 %v48
    %v456 = vunpack.c.h.b16 %v48
    %v457 = vunpack.c.l.b16 %v49
    %v458 = vunpack.c.h.b16 %v49
    %v459 = vunpack.c.l.b16 %v50
    %v460 = vunpack.c.h.b16 %v50
    %v461 = vunpack.c.l.b16 %v51
    %v462 = vunpack.c.l.b16 %v52
    %v463 = vunpack.c.h.b16 %v52
    %v464 = vunpack.c.l.b16 %v53
    %v465 = vunpack.c.h.b16 %v53
    %v466 = vunpack.c.l.b16 %v54
    %v467 = vunpack.c.h.b16 %v54
    %v468 = vunpack.c.l.b16 %v55
    %v469 = vunpack.c.l.b16 %v56
    %v470 = vunpack.c.h.b16 %v56
    %v471 = vunpack.c.l.b16 %v57
    %v472 = vunpack.c.h.b16 %v57
    %v473 = vunpack.c.l.b16 %v58
    %v474 = vunpack.c.h.b16 %v58
    %v475 = vunpack.c.l.b16 %v59
    %v476 = vunpack.c.l.b16 %v60
    %v477 = vunpack.c.h.b16 %v60
    %v478 = vunpack.c.l.b16 %v61
    %v479 = vunpack.c.h.b16 %v61
    %v480 = vunpack.c.l.b16 %v62
    %v481 = vunpack.c.h.b16 %v62
    %v482 = vunpack.c.l.b16 %v63
    %v483 = vunpack.c.l.b16 %v64
    %v484 = vunpack.c.h.b16 %v64
    %v485 = vunpack.c.l.b16 %v65
    %v486 = vunpack.c.h.b16 %v65
    %v487 = vunpack.c.l.b16 %v66
    %v488 = vunpack.c.h.b16 %v66
    %v489 = vunpack.c.l.b16 %v67
    %v490 = vunpack.c.l.b16 %v68
    %v491 = vunpack.c.h.b16 %v68
    %v492 = vunpack.c.l.b16 %v69
    %v493 = vunpack.c.h.b16 %v69
    %v494 = vunpack.c.l.b16 %v70
    %v495 = vunpack.c.h.b16 %v70
    %v496 = vunpack.c.l.b16 %v71
    %v497 = vpack.c.b16 %v455, %v448
    %v498 = vpack.c.b16 %v456, %v449
    %v499 = vpack.c.b16 %v457, %v450
    %v500 = vpack.c.b16 %v458, %v451
    %v501 = vpack.c.b16 %v459, %v452
    %v502 = vpack.c.b16 %v460, %v453
    %v503 = vpack.c.b16 %v461, %v454
    %v504 = vpack.c.b16 %v469, %v462
    %v505 = vpack.c.b16 %v470, %v463
    %v506 = vpack.c.b16 %v471, %v464
    %v507 = vpack.c.b16 %v472, %v465
    %v508 = vpack.c.b16 %v473, %v466
    %v509 = vpack.c.b16 %v474, %v467
    %v510 = vpack.c.b16 %v475, %v468
    %v511 = vpack.c.b16 %v483, %v476
    %v512 = vpack.c.b16 %v484, %v477
    %v513 = vpack.c.b16 %v485, %v478
    %v514 = vpack.c.b16 %v486, %v479
    %v515 = vpack.c.b16 %v487, %v480
    %v516 = vpack.c.b16 %v488, %v481
    %v517 = vpack.c.b16 %v489, %v482
    %v518 = vpack.c.b16 %v490, %v490
    %v519 = vpack.c.b16 %v491, %v491
    %v520 = vpack.c.b16 %v492, %v492
    %v521 = vpack.c.b16 %v493, %v493
    %v522 = vpack.c.b16 %v494, %v494
    %v523 = vpack.c.b16 %v495, %v495
    %v524 = vpack.c.b16 %v496, %v496
    %v547 = vsel %vm231, %v43, 0
    %v550 = vsel %vm235, %v518, 0
    %v553 = vsel %vm235, %v519, 0
    %v556 = vsel %vm235, %v520, 0
    %v559 = vsel %vm235, %v521, 0
    %v562 = vsel %vm235, %v522, 0
    %v565 = vsel %vm235, %v523, 0
    %v568 = vsel %vm235, %v524, 0
    %570 = vmatprep.subr.bf16.mxu0 %v498
    %571 = vmatpush1.bf16.msra.mxu0 %v497
    %572 = vmatprep.subr.bf16.mxu0 %v505
    %573 = vmatpush1.bf16.msra.mxu0 %v504
    %574 = vmatprep.subr.bf16.mxu0 %v512
    %575 = vmatpush1.bf16.msra.mxu0 %v511
    %576 = vmatprep.subr.bf16.mxu0 %v553
    %577 = vmatpush1.bf16.msra.mxu0 %v550
    %578 = vmatprep.subr.bf16.mxu0 0
    %579 = vmatpush1.bf16.msra.mxu0 0
    %580 = vmatprep.subr.bf16.mxu0 0
    %581 = vmatpush1.bf16.msra.mxu0 0
    %582 = vmatprep.subr.bf16.mxu0 0
    %583 = vmatpush1.bf16.msra.mxu0 0
    %584 = vmatprep.subr.bf16.mxu0 0
    %585 = vmatpush1.bf16.msra.mxu0 0
    %586 = vmatprep.subr.bf16.mxu0 0
    %587 = vmatpush1.bf16.msra.mxu0 0
    %588 = vmatprep.subr.bf16.mxu0 0
    %589 = vmatpush1.bf16.msra.mxu0 0
    %590 = vmatprep.subr.bf16.mxu0 0
    %591 = vmatpush1.bf16.msra.mxu0 0
    %592 = vmatprep.subr.bf16.mxu0 0
    %593 = vmatpush1.bf16.msra.mxu0 0
    %594 = vmatprep.subr.bf16.mxu0 0
    %595 = vmatpush1.bf16.msra.mxu0 0
    %596 = vmatprep.subr.bf16.mxu0 0
    %597 = vmatpush1.bf16.msra.mxu0 0
    %598 = vmatprep.subr.bf16.mxu0 0
    %599 = vmatpush1.bf16.msra.mxu0 0
    %600 = vmatprep.subr.bf16.mxu0 0
    %601 = vmatpush1.bf16.msra.mxu0 0
    %602 = vmatprep.mubr.bf16.mxu0 0
    %603 = vmatmul.mubr.bf16.gmra.mrb[0].mxu0 %v547
    %v604 = vpop.f32.mrb[0].mxu0
    %v605 = vadd.f32 %v292, %v604
    %v606 = vpop.f32.mrb[0].mxu0
    %v607 = vadd.f32 %v294, %v606
    %v608 = vpop.f32.mrb[0].mxu0
    %v609 = vpop.f32.mrb[0].mxu0
    %610 = vdwg.mxu0
    %611 = vmatprep.subr.bf16.mxu0 %v500
    %612 = vmatpush1.bf16.msra.mxu0 %v499
    %613 = vmatprep.subr.bf16.mxu0 %v507
    %614 = vmatpush1.bf16.msra.mxu0 %v506
    %615 = vmatprep.subr.bf16.mxu0 %v514
    %616 = vmatpush1.bf16.msra.mxu0 %v513
    %617 = vmatprep.subr.bf16.mxu0 %v559
    %618 = vmatpush1.bf16.msra.mxu0 %v556
    %619 = vmatprep.subr.bf16.mxu0 0
    %620 = vmatpush1.bf16.msra.mxu0 0
    %621 = vmatprep.subr.bf16.mxu0 0
    %622 = vmatpush1.bf16.msra.mxu0 0
    %623 = vmatprep.subr.bf16.mxu0 0
    %624 = vmatpush1.bf16.msra.mxu0 0
    %625 = vmatprep.subr.bf16.mxu0 0
    %626 = vmatpush1.bf16.msra.mxu0 0
    %627 = vmatprep.subr.bf16.mxu0 0
    %628 = vmatpush1.bf16.msra.mxu0 0
    %629 = vmatprep.subr.bf16.mxu0 0
    %630 = vmatpush1.bf16.msra.mxu0 0
    %631 = vmatprep.subr.bf16.mxu0 0
    %632 = vmatpush1.bf16.msra.mxu0 0
    %633 = vmatprep.subr.bf16.mxu0 0
    %634 = vmatpush1.bf16.msra.mxu0 0
    %635 = vmatprep.subr.bf16.mxu0 0
    %636 = vmatpush1.bf16.msra.mxu0 0
    %637 = vmatprep.subr.bf16.mxu0 0
    %638 = vmatpush1.bf16.msra.mxu0 0
    %639 = vmatprep.subr.bf16.mxu0 0
    %640 = vmatpush1.bf16.msra.mxu0 0
    %641 = vmatprep.subr.bf16.mxu0 0
    %642 = vmatpush1.bf16.msra.mxu0 0
    %643 = vmatprep.mubr.bf16.mxu0 0
    %644 = vmatmul.mubr.bf16.gmra.mrb[0].mxu0 %v547
    %v645 = vpop.f32.mrb[0].mxu0
    %v646 = vadd.f32 %v333, %v645
    %v647 = vpop.f32.mrb[0].mxu0
    %v648 = vadd.f32 %v335, %v647
    %v649 = vpop.f32.mrb[0].mxu0
    %v650 = vpop.f32.mrb[0].mxu0
    %651 = vdwg.mxu0
    %652 = vmatprep.subr.bf16.mxu0 %v502
    %653 = vmatpush1.bf16.msra.mxu0 %v501
    %654 = vmatprep.subr.bf16.mxu0 %v509
    %655 = vmatpush1.bf16.msra.mxu0 %v508
    %656 = vmatprep.subr.bf16.mxu0 %v516
    %657 = vmatpush1.bf16.msra.mxu0 %v515
    %658 = vmatprep.subr.bf16.mxu0 %v565
    %659 = vmatpush1.bf16.msra.mxu0 %v562
    %660 = vmatprep.subr.bf16.mxu0 0
    %661 = vmatpush1.bf16.msra.mxu0 0
    %662 = vmatprep.subr.bf16.mxu0 0
    %663 = vmatpush1.bf16.msra.mxu0 0
    %664 = vmatprep.subr.bf16.mxu0 0
    %665 = vmatpush1.bf16.msra.mxu0 0
    %666 = vmatprep.subr.bf16.mxu0 0
    %667 = vmatpush1.bf16.msra.mxu0 0
    %668 = vmatprep.subr.bf16.mxu0 0
    %669 = vmatpush1.bf16.msra.mxu0 0
    %670 = vmatprep.subr.bf16.mxu0 0
    %671 = vmatpush1.bf16.msra.mxu0 0
    %672 = vmatprep.subr.bf16.mxu0 0
    %673 = vmatpush1.bf16.msra.mxu0 0
    %674 = vmatprep.subr.bf16.mxu0 0
    %675 = vmatpush1.bf16.msra.mxu0 0
    %676 = vmatprep.subr.bf16.mxu0 0
    %677 = vmatpush1.bf16.msra.mxu0 0
    %678 = vmatprep.subr.bf16.mxu0 0
    %679 = vmatpush1.bf16.msra.mxu0 0
    %680 = vmatprep.subr.bf16.mxu0 0
    %681 = vmatpush1.bf16.msra.mxu0 0
    %682 = vmatprep.subr.bf16.mxu0 0
    %683 = vmatpush1.bf16.msra.mxu0 0
    %684 = vmatprep.mubr.bf16.mxu0 0
    %685 = vmatmul.mubr.bf16.gmra.mrb[0].mxu0 %v547
    %v686 = vpop.f32.mrb[0].mxu0
    %v687 = vadd.f32 %v374, %v686
    %v688 = vpop.f32.mrb[0].mxu0
    %v689 = vadd.f32 %v376, %v688
    %v690 = vpop.f32.mrb[0].mxu0
    %v691 = vpop.f32.mrb[0].mxu0
    %692 = vdwg.mxu0
    %693 = vmatprep.subr.bf16.mxu0 0
    %694 = vmatpush1.bf16.msra.mxu0 %v503
    %695 = vmatprep.subr.bf16.mxu0 0
    %696 = vmatpush1.bf16.msra.mxu0 %v510
    %697 = vmatprep.subr.bf16.mxu0 0
    %698 = vmatpush1.bf16.msra.mxu0 %v517
    %699 = vmatprep.subr.bf16.mxu0 0
    %700 = vmatpush1.bf16.msra.mxu0 %v568
    %701 = vmatprep.subr.bf16.mxu0 0
    %702 = vmatpush1.bf16.msra.mxu0 0
    %703 = vmatprep.subr.bf16.mxu0 0
    %704 = vmatpush1.bf16.msra.mxu0 0
    %705 = vmatprep.subr.bf16.mxu0 0
    %706 = vmatpush1.bf16.msra.mxu0 0
    %707 = vmatprep.subr.bf16.mxu0 0
    %708 = vmatpush1.bf16.msra.mxu0 0
    %709 = vmatprep.subr.bf16.mxu0 0
    %710 = vmatpush1.bf16.msra.mxu0 0
    %711 = vmatprep.subr.bf16.mxu0 0
    %712 = vmatpush1.bf16.msra.mxu0 0
    %713 = vmatprep.subr.bf16.mxu0 0
    %714 = vmatpush1.bf16.msra.mxu0 0
    %715 = vmatprep.subr.bf16.mxu0 0
    %716 = vmatpush1.bf16.msra.mxu0 0
    %717 = vmatprep.subr.bf16.mxu0 0
    %718 = vmatpush1.bf16.msra.mxu0 0
    %719 = vmatprep.subr.bf16.mxu0 0
    %720 = vmatpush1.bf16.msra.mxu0 0
    %721 = vmatprep.subr.bf16.mxu0 0
    %722 = vmatpush1.bf16.msra.mxu0 0
    %723 = vmatprep.subr.bf16.mxu0 0
    %724 = vmatpush1.bf16.msra.mxu0 0
    %725 = vmatprep.mubr.bf16.mxu0 0
    %726 = vmatmul.mubr.bf16.gmra.mrb[0].mxu0 %v547
    %v727 = vpop.f32.mrb[0].mxu0
    %v728 = vadd.f32 %v415, %v727
    %v729 = vpop.f32.mrb[0].mxu0
    %v730 = vpop.f32.mrb[0].mxu0
    %v731 = vpop.f32.mrb[0].mxu0
    %732 = vdwg.mxu0
    %vm733 = vcmp.eq.s32.totalorder %v39, 2
    %v734 = vsel %vm733, 1, 0
    %v735 = vcvt.s32.f32 %v734
    %v736 = vpack.c.bf16 %v735, %v735
    %s737 = scalar_lea.vmem [#allocation5], 392
    %v738 = vld [vmem:[%s737] sm:$0xff]
    %v739 = vld [vmem:[%s737 + $0x8] sm:$0xff]
    %v740 = vld [vmem:[%s737 + $0x10] sm:$0xff]
    %v741 = vld [vmem:[%s737 + $0x18] sm:$0xf]
    %v742 = vld [vmem:[%s737 + $0x1c] sm:$0xff]
    %v743 = vld [vmem:[%s737 + $0x24] sm:$0xff]
    %v744 = vld [vmem:[%s737 + $0x2c] sm:$0xff]
    %v745 = vld [vmem:[%s737 + $0x34] sm:$0xf]
    %v746 = vld [vmem:[%s737 + $0x38] sm:$0xff]
    %v747 = vld [vmem:[%s737 + $0x40] sm:$0xff]
    %v748 = vld [vmem:[%s737 + $0x48] sm:$0xff]
    %v749 = vld [vmem:[%s737 + $0x50] sm:$0xf]
    %v750 = vld [vmem:[%s737 + $0x54] sm:$0xff]
    %v751 = vld [vmem:[%s737 + $0x5c] sm:$0xff]
    %v752 = vld [vmem:[%s737 + $0x64] sm:$0xff]
    %v753 = vld [vmem:[%s737 + $0x6c] sm:$0xf]
    %v754 = vld [vmem:[%s737 + $0x70] sm:$0xff]
    %v755 = vld [vmem:[%s737 + $0x78] sm:$0xff]
    %v756 = vld [vmem:[%s737 + $0x80] sm:$0xff]
    %v757 = vld [vmem:[%s737 + $0x88] sm:$0xf]
    %v758 = vld [vmem:[%s737 + $0x8c] sm:$0xff]
    %v759 = vld [vmem:[%s737 + $0x94] sm:$0xff]
    %v760 = vld [vmem:[%s737 + $0x9c] sm:$0xff]
    %v761 = vld [vmem:[%s737 + $0xa4] sm:$0xf]
    %v762 = vld [vmem:[%s737 + $0xa8] sm:$0xff]
    %v763 = vld [vmem:[%s737 + $0xb0] sm:$0xff]
    %v764 = vld [vmem:[%s737 + $0xb8] sm:$0xff]
    %v765 = vld [vmem:[%s737 + $0xc0] sm:$0xf]
    %v794 = vunpack.c.l.b16 %v738
    %v795 = vunpack.c.h.b16 %v738
    %v796 = vunpack.c.l.b16 %v739
    %v797 = vunpack.c.h.b16 %v739
    %v798 = vunpack.c.l.b16 %v740
    %v799 = vunpack.c.h.b16 %v740
    %v800 = vunpack.c.l.b16 %v741
    %v801 = vunpack.c.l.b16 %v742
    %v802 = vunpack.c.h.b16 %v742
    %v803 = vunpack.c.l.b16 %v743
    %v804 = vunpack.c.h.b16 %v743
    %v805 = vunpack.c.l.b16 %v744
    %v806 = vunpack.c.h.b16 %v744
    %v807 = vunpack.c.l.b16 %v745
    %v808 = vunpack.c.l.b16 %v746
    %v809 = vunpack.c.h.b16 %v746
    %v810 = vunpack.c.l.b16 %v747
    %v811 = vunpack.c.h.b16 %v747
    %v812 = vunpack.c.l.b16 %v748
    %v813 = vunpack.c.h.b16 %v748
    %v814 = vunpack.c.l.b16 %v749
    %v815 = vunpack.c.l.b16 %v750
    %v816 = vunpack.c.h.b16 %v750
    %v817 = vunpack.c.l.b16 %v751
    %v818 = vunpack.c.h.b16 %v751
    %v819 = vunpack.c.l.b16 %v752
    %v820 = vunpack.c.h.b16 %v752
    %v821 = vunpack.c.l.b16 %v753
    %v822 = vunpack.c.l.b16 %v754
    %v823 = vunpack.c.h.b16 %v754
    %v824 = vunpack.c.l.b16 %v755
    %v825 = vunpack.c.h.b16 %v755
    %v826 = vunpack.c.l.b16 %v756
    %v827 = vunpack.c.h.b16 %v756
    %v828 = vunpack.c.l.b16 %v757
    %v829 = vunpack.c.l.b16 %v758
    %v830 = vunpack.c.h.b16 %v758
    %v831 = vunpack.c.l.b16 %v759
    %v832 = vunpack.c.h.b16 %v759
    %v833 = vunpack.c.l.b16 %v760
    %v834 = vunpack.c.h.b16 %v760
    %v835 = vunpack.c.l.b16 %v761
    %v836 = vunpack.c.l.b16 %v762
    %v837 = vunpack.c.h.b16 %v762
    %v838 = vunpack.c.l.b16 %v763
    %v839 = vunpack.c.h.b16 %v763
    %v840 = vunpack.c.l.b16 %v764
    %v841 = vunpack.c.h.b16 %v764
    %v842 = vunpack.c.l.b16 %v765
    %v843 = vpack.c.b16 %v801, %v794
    %v844 = vpack.c.b16 %v802, %v795
    %v845 = vpack.c.b16 %v803, %v796
    %v846 = vpack.c.b16 %v804, %v797
    %v847 = vpack.c.b16 %v805, %v798
    %v848 = vpack.c.b16 %v806, %v799
    %v849 = vpack.c.b16 %v807, %v800
    %v850 = vpack.c.b16 %v815, %v808
    %v851 = vpack.c.b16 %v816, %v809
    %v852 = vpack.c.b16 %v817, %v810
    %v853 = vpack.c.b16 %v818, %v811
    %v854 = vpack.c.b16 %v819, %v812
    %v855 = vpack.c.b16 %v820, %v813
    %v856 = vpack.c.b16 %v821, %v814
    %v857 = vpack.c.b16 %v829, %v822
    %v858 = vpack.c.b16 %v830, %v823
    %v859 = vpack.c.b16 %v831, %v824
    %v860 = vpack.c.b16 %v832, %v825
    %v861 = vpack.c.b16 %v833, %v826
    %v862 = vpack.c.b16 %v834, %v827
    %v863 = vpack.c.b16 %v835, %v828
    %v864 = vpack.c.b16 %v836, %v836
    %v865 = vpack.c.b16 %v837, %v837
    %v866 = vpack.c.b16 %v838, %v838
    %v867 = vpack.c.b16 %v839, %v839
    %v868 = vpack.c.b16 %v840, %v840
    %v869 = vpack.c.b16 %v841, %v841
    %v870 = vpack.c.b16 %v842, %v842
    %v893 = vsel %vm231, %v736, 0
    %v896 = vsel %vm235, %v864, 0
    %v899 = vsel %vm235, %v865, 0
    %v902 = vsel %vm235, %v866, 0
    %v905 = vsel %vm235, %v867, 0
    %v908 = vsel %vm235, %v868, 0
    %v911 = vsel %vm235, %v869, 0
    %v914 = vsel %vm235, %v870, 0
    %916 = vmatprep.subr.bf16.mxu0 %v844
    %917 = vmatpush1.bf16.msra.mxu0 %v843
    %918 = vmatprep.subr.bf16.mxu0 %v851
    %919 = vmatpush1.bf16.msra.mxu0 %v850
    %920 = vmatprep.subr.bf16.mxu0 %v858
    %921 = vmatpush1.bf16.msra.mxu0 %v857
    %922 = vmatprep.subr.bf16.mxu0 %v899
    %923 = vmatpush1.bf16.msra.mxu0 %v896
    %924 = vmatprep.subr.bf16.mxu0 0
    %925 = vmatpush1.bf16.msra.mxu0 0
    %926 = vmatprep.subr.bf16.mxu0 0
    %927 = vmatpush1.bf16.msra.mxu0 0
    %928 = vmatprep.subr.bf16.mxu0 0
    %929 = vmatpush1.bf16.msra.mxu0 0
    %930 = vmatprep.subr.bf16.mxu0 0
    %931 = vmatpush1.bf16.msra.mxu0 0
    %932 = vmatprep.subr.bf16.mxu0 0
    %933 = vmatpush1.bf16.msra.mxu0 0
    %934 = vmatprep.subr.bf16.mxu0 0
    %935 = vmatpush1.bf16.msra.mxu0 0
    %936 = vmatprep.subr.bf16.mxu0 0
    %937 = vmatpush1.bf16.msra.mxu0 0
    %938 = vmatprep.subr.bf16.mxu0 0
    %939 = vmatpush1.bf16.msra.mxu0 0
    %940 = vmatprep.subr.bf16.mxu0 0
    %941 = vmatpush1.bf16.msra.mxu0 0
    %942 = vmatprep.subr.bf16.mxu0 0
    %943 = vmatpush1.bf16.msra.mxu0 0
    %944 = vmatprep.subr.bf16.mxu0 0
    %945 = vmatpush1.bf16.msra.mxu0 0
    %946 = vmatprep.subr.bf16.mxu0 0
    %947 = vmatpush1.bf16.msra.mxu0 0
    %948 = vmatprep.mubr.bf16.mxu0 0
    %949 = vmatmul.mubr.bf16.gmra.mrb[0].mxu0 %v893
    %v950 = vpop.f32.mrb[0].mxu0
    %v951 = vadd.f32 0.0, %v950
    %v952 = vpop.f32.mrb[0].mxu0
    %v953 = vadd.f32 0.0, %v952
    %v954 = vpop.f32.mrb[0].mxu0
    %v955 = vpop.f32.mrb[0].mxu0
    %956 = vdwg.mxu0
    %957 = vmatprep.subr.bf16.mxu0 %v846
    %958 = vmatpush1.bf16.msra.mxu0 %v845
    %959 = vmatprep.subr.bf16.mxu0 %v853
    %960 = vmatpush1.bf16.msra.mxu0 %v852
    %961 = vmatprep.subr.bf16.mxu0 %v860
    %962 = vmatpush1.bf16.msra.mxu0 %v859
    %963 = vmatprep.subr.bf16.mxu0 %v905
    %964 = vmatpush1.bf16.msra.mxu0 %v902
    %965 = vmatprep.subr.bf16.mxu0 0
    %966 = vmatpush1.bf16.msra.mxu0 0
    %967 = vmatprep.subr.bf16.mxu0 0
    %968 = vmatpush1.bf16.msra.mxu0 0
    %969 = vmatprep.subr.bf16.mxu0 0
    %970 = vmatpush1.bf16.msra.mxu0 0
    %971 = vmatprep.subr.bf16.mxu0 0
    %972 = vmatpush1.bf16.msra.mxu0 0
    %973 = vmatprep.subr.bf16.mxu0 0
    %974 = vmatpush1.bf16.msra.mxu0 0
    %975 = vmatprep.subr.bf16.mxu0 0
    %976 = vmatpush1.bf16.msra.mxu0 0
    %977 = vmatprep.subr.bf16.mxu0 0
    %978 = vmatpush1.bf16.msra.mxu0 0
    %979 = vmatprep.subr.bf16.mxu0 0
    %980 = vmatpush1.bf16.msra.mxu0 0
    %981 = vmatprep.subr.bf16.mxu0 0
    %982 = vmatpush1.bf16.msra.mxu0 0
    %983 = vmatprep.subr.bf16.mxu0 0
    %984 = vmatpush1.bf16.msra.mxu0 0
    %985 = vmatprep.subr.bf16.mxu0 0
    %986 = vmatpush1.bf16.msra.mxu0 0
    %987 = vmatprep.subr.bf16.mxu0 0
    %988 = vmatpush1.bf16.msra.mxu0 0
    %989 = vmatprep.mubr.bf16.mxu0 0
    %990 = vmatmul.mubr.bf16.gmra.mrb[0].mxu0 %v893
    %v991 = vpop.f32.mrb[0].mxu0
    %v992 = vadd.f32 0.0, %v991
    %v993 = vpop.f32.mrb[0].mxu0
    %v994 = vadd.f32 0.0, %v993
    %v995 = vpop.f32.mrb[0].mxu0
    %v996 = vpop.f32.mrb[0].mxu0
    %997 = vdwg.mxu0
    %998 = vmatprep.subr.bf16.mxu0 %v848
    %999 = vmatpush1.bf16.msra.mxu0 %v847
    %1000 = vmatprep.subr.bf16.mxu0 %v855
    %1001 = vmatpush1.bf16.msra.mxu0 %v854
    %1002 = vmatprep.subr.bf16.mxu0 %v862
    %1003 = vmatpush1.bf16.msra.mxu0 %v861
    %1004 = vmatprep.subr.bf16.mxu0 %v911
    %1005 = vmatpush1.bf16.msra.mxu0 %v908
    %1006 = vmatprep.subr.bf16.mxu0 0
    %1007 = vmatpush1.bf16.msra.mxu0 0
    %1008 = vmatprep.subr.bf16.mxu0 0
    %1009 = vmatpush1.bf16.msra.mxu0 0
    %1010 = vmatprep.subr.bf16.mxu0 0
    %1011 = vmatpush1.bf16.msra.mxu0 0
    %1012 = vmatprep.subr.bf16.mxu0 0
    %1013 = vmatpush1.bf16.msra.mxu0 0
    %1014 = vmatprep.subr.bf16.mxu0 0
    %1015 = vmatpush1.bf16.msra.mxu0 0
    %1016 = vmatprep.subr.bf16.mxu0 0
    %1017 = vmatpush1.bf16.msra.mxu0 0
    %1018 = vmatprep.subr.bf16.mxu0 0
    %1019 = vmatpush1.bf16.msra.mxu0 0
    %1020 = vmatprep.subr.bf16.mxu0 0
    %1021 = vmatpush1.bf16.msra.mxu0 0
    %1022 = vmatprep.subr.bf16.mxu0 0
    %1023 = vmatpush1.bf16.msra.mxu0 0
    %1024 = vmatprep.subr.bf16.mxu0 0
    %1025 = vmatpush1.bf16.msra.mxu0 0
    %1026 = vmatprep.subr.bf16.mxu0 0
    %1027 = vmatpush1.bf16.msra.mxu0 0
    %1028 = vmatprep.subr.bf16.mxu0 0
    %1029 = vmatpush1.bf16.msra.mxu0 0
    %1030 = vmatprep.mubr.bf16.mxu0 0
    %1031 = vmatmul.mubr.bf16.gmra.mrb[0].mxu0 %v893
    %v1032 = vpop.f32.mrb[0].mxu0
    %v1033 = vadd.f32 0.0, %v1032
    %v1034 = vpop.f32.mrb[0].mxu0
    %v1035 = vadd.f32 0.0, %v1034
    %v1036 = vpop.f32.mrb[0].mxu0
    %v1037 = vpop.f32.mrb[0].mxu0
    %1038 = vdwg.mxu0
    %1039 = vmatprep.subr.bf16.mxu0 0
    %1040 = vmatpush1.bf16.msra.mxu0 %v849
    %1041 = vmatprep.subr.bf16.mxu0 0
    %1042 = vmatpush1.bf16.msra.mxu0 %v856
    %1043 = vmatprep.subr.bf16.mxu0 0
    %1044 = vmatpush1.bf16.msra.mxu0 %v863
    %1045 = vmatprep.subr.bf16.mxu0 0
    %1046 = vmatpush1.bf16.msra.mxu0 %v914
    %1047 = vmatprep.subr.bf16.mxu0 0
    %1048 = vmatpush1.bf16.msra.mxu0 0
    %1049 = vmatprep.subr.bf16.mxu0 0
    %1050 = vmatpush1.bf16.msra.mxu0 0
    %1051 = vmatprep.subr.bf16.mxu0 0
    %1052 = vmatpush1.bf16.msra.mxu0 0
    %1053 = vmatprep.subr.bf16.mxu0 0
    %1054 = vmatpush1.bf16.msra.mxu0 0
    %1055 = vmatprep.subr.bf16.mxu0 0
    %1056 = vmatpush1.bf16.msra.mxu0 0
    %1057 = vmatprep.subr.bf16.mxu0 0
    %1058 = vmatpush1.bf16.msra.mxu0 0
    %1059 = vmatprep.subr.bf16.mxu0 0
    %1060 = vmatpush1.bf16.msra.mxu0 0
    %1061 = vmatprep.subr.bf16.mxu0 0
    %1062 = vmatpush1.bf16.msra.mxu0 0
    %1063 = vmatprep.subr.bf16.mxu0 0
    %1064 = vmatpush1.bf16.msra.mxu0 0
    %1065 = vmatprep.subr.bf16.mxu0 0
    %1066 = vmatpush1.bf16.msra.mxu0 0
    %1067 = vmatprep.subr.bf16.mxu0 0
    %1068 = vmatpush1.bf16.msra.mxu0 0
    %1069 = vmatprep.subr.bf16.mxu0 0
    %1070 = vmatpush1.bf16.msra.mxu0 0
    %1071 = vmatprep.mubr.bf16.mxu0 0
    %1072 = vmatmul.mubr.bf16.gmra.mrb[0].mxu0 %v893
    %v1073 = vpop.f32.mrb[0].mxu0
    %v1074 = vadd.f32 0.0, %v1073
    %v1075 = vpop.f32.mrb[0].mxu0
    %v1076 = vpop.f32.mrb[0].mxu0
    %v1077 = vpop.f32.mrb[0].mxu0
    %1078 = vdwg.mxu0
    %v1079 = vadd.f32 %v605, %v951
    %v1080 = vadd.f32 %v607, %v953
    %v1081 = vadd.f32 %v646, %v992
    %v1082 = vadd.f32 %v648, %v994
    %v1083 = vadd.f32 %v687, %v1033
    %v1084 = vadd.f32 %v689, %v1035
    %v1085 = vadd.f32 %v728, %v1074
    %vm1086 = vcmp.eq.s32.totalorder %v39, 3
    %v1087 = vsel %vm1086, 1, 0
    %v1088 = vcvt.s32.f32 %v1087
    %v1089 = vpack.c.bf16 %v1088, %v1088
    %s1090 = scalar_lea.vmem [#allocation5], 588
    %v1091 = vld [vmem:[%s1090] sm:$0xff]
    %v1092 = vld [vmem:[%s1090 + $0x8] sm:$0xff]
    %v1093 = vld [vmem:[%s1090 + $0x10] sm:$0xff]
    %v1094 = vld [vmem:[%s1090 + $0x18] sm:$0xf]
    %v1095 = vld [vmem:[%s1090 + $0x1c] sm:$0xff]
    %v1096 = vld [vmem:[%s1090 + $0x24] sm:$0xff]
    %v1097 = vld [vmem:[%s1090 + $0x2c] sm:$0xff]
    %v1098 = vld [vmem:[%s1090 + $0x34] sm:$0xf]
    %v1099 = vld [vmem:[%s1090 + $0x38] sm:$0xff]
    %v1100 = vld [vmem:[%s1090 + $0x40] sm:$0xff]
    %v1101 = vld [vmem:[%s1090 + $0x48] sm:$0xff]
    %v1102 = vld [vmem:[%s1090 + $0x50] sm:$0xf]
    %v1103 = vld [vmem:[%s1090 + $0x54] sm:$0xff]
    %v1104 = vld [vmem:[%s1090 + $0x5c] sm:$0xff]
    %v1105 = vld [vmem:[%s1090 + $0x64] sm:$0xff]
    %v1106 = vld [vmem:[%s1090 + $0x6c] sm:$0xf]
    %v1107 = vld [vmem:[%s1090 + $0x70] sm:$0xff]
    %v1108 = vld [vmem:[%s1090 + $0x78] sm:$0xff]
    %v1109 = vld [vmem:[%s1090 + $0x80] sm:$0xff]
    %v1110 = vld [vmem:[%s1090 + $0x88] sm:$0xf]
    %v1111 = vld [vmem:[%s1090 + $0x8c] sm:$0xff]
    %v1112 = vld [vmem:[%s1090 + $0x94] sm:$0xff]
    %v1113 = vld [vmem:[%s1090 + $0x9c] sm:$0xff]
    %v1114 = vld [vmem:[%s1090 + $0xa4] sm:$0xf]
    %v1115 = vld [vmem:[%s1090 + $0xa8] sm:$0xff]
    %v1116 = vld [vmem:[%s1090 + $0xb0] sm:$0xff]
    %v1117 = vld [vmem:[%s1090 + $0xb8] sm:$0xff]
    %v1118 = vld [vmem:[%s1090 + $0xc0] sm:$0xf]
    %v1147 = vunpack.c.l.b16 %v1091
    %v1148 = vunpack.c.h.b16 %v1091
    %v1149 = vunpack.c.l.b16 %v1092
    %v1150 = vunpack.c.h.b16 %v1092
    %v1151 = vunpack.c.l.b16 %v1093
    %v1152 = vunpack.c.h.b16 %v1093
    %v1153 = vunpack.c.l.b16 %v1094
    %v1154 = vunpack.c.l.b16 %v1095
    %v1155 = vunpack.c.h.b16 %v1095
    %v1156 = vunpack.c.l.b16 %v1096
    %v1157 = vunpack.c.h.b16 %v1096
    %v1158 = vunpack.c.l.b16 %v1097
    %v1159 = vunpack.c.h.b16 %v1097
    %v1160 = vunpack.c.l.b16 %v1098
    %v1161 = vunpack.c.l.b16 %v1099
    %v1162 = vunpack.c.h.b16 %v1099
    %v1163 = vunpack.c.l.b16 %v1100
    %v1164 = vunpack.c.h.b16 %v1100
    %v1165 = vunpack.c.l.b16 %v1101
    %v1166 = vunpack.c.h.b16 %v1101
    %v1167 = vunpack.c.l.b16 %v1102
    %v1168 = vunpack.c.l.b16 %v1103
    %v1169 = vunpack.c.h.b16 %v1103
    %v1170 = vunpack.c.l.b16 %v1104
    %v1171 = vunpack.c.h.b16 %v1104
    %v1172 = vunpack.c.l.b16 %v1105
    %v1173 = vunpack.c.h.b16 %v1105
    %v1174 = vunpack.c.l.b16 %v1106
    %v1175 = vunpack.c.l.b16 %v1107
    %v1176 = vunpack.c.h.b16 %v1107
    %v1177 = vunpack.c.l.b16 %v1108
    %v1178 = vunpack.c.h.b16 %v1108
    %v1179 = vunpack.c.l.b16 %v1109
    %v1180 = vunpack.c.h.b16 %v1109
    %v1181 = vunpack.c.l.b16 %v1110
    %v1182 = vunpack.c.l.b16 %v1111
    %v1183 = vunpack.c.h.b16 %v1111
    %v1184 = vunpack.c.l.b16 %v1112
    %v1185 = vunpack.c.h.b16 %v1112
    %v1186 = vunpack.c.l.b16 %v1113
    %v1187 = vunpack.c.h.b16 %v1113
    %v1188 = vunpack.c.l.b16 %v1114
    %v1189 = vunpack.c.l.b16 %v1115
    %v1190 = vunpack.c.h.b16 %v1115
    %v1191 = vunpack.c.l.b16 %v1116
    %v1192 = vunpack.c.h.b16 %v1116
    %v1193 = vunpack.c.l.b16 %v1117
    %v1194 = vunpack.c.h.b16 %v1117
    %v1195 = vunpack.c.l.b16 %v1118
    %v1196 = vpack.c.b16 %v1154, %v1147
    %v1197 = vpack.c.b16 %v1155, %v1148
    %v1198 = vpack.c.b16 %v1156, %v1149
    %v1199 = vpack.c.b16 %v1157, %v1150
    %v1200 = vpack.c.b16 %v1158, %v1151
    %v1201 = vpack.c.b16 %v1159, %v1152
    %v1202 = vpack.c.b16 %v1160, %v1153
    %v1203 = vpack.c.b16 %v1168, %v1161
    %v1204 = vpack.c.b16 %v1169, %v1162
    %v1205 = vpack.c.b16 %v1170, %v1163
    %v1206 = vpack.c.b16 %v1171, %v1164
    %v1207 = vpack.c.b16 %v1172, %v1165
    %v1208 = vpack.c.b16 %v1173, %v1166
    %v1209 = vpack.c.b16 %v1174, %v1167
    %v1210 = vpack.c.b16 %v1182, %v1175
    %v1211 = vpack.c.b16 %v1183, %v1176
    %v1212 = vpack.c.b16 %v1184, %v1177
    %v1213 = vpack.c.b16 %v1185, %v1178
    %v1214 = vpack.c.b16 %v1186, %v1179
    %v1215 = vpack.c.b16 %v1187, %v1180
    %v1216 = vpack.c.b16 %v1188, %v1181
    %v1217 = vpack.c.b16 %v1189, %v1189
    %v1218 = vpack.c.b16 %v1190, %v1190
    %v1219 = vpack.c.b16 %v1191, %v1191
    %v1220 = vpack.c.b16 %v1192, %v1192
    %v1221 = vpack.c.b16 %v1193, %v1193
    %v1222 = vpack.c.b16 %v1194, %v1194
    %v1223 = vpack.c.b16 %v1195, %v1195
    %v1246 = vsel %vm231, %v1089, 0
    %v1249 = vsel %vm235, %v1217, 0
    %v1252 = vsel %vm235, %v1218, 0
    %v1255 = vsel %vm235, %v1219, 0
    %v1258 = vsel %vm235, %v1220, 0
    %v1261 = vsel %vm235, %v1221, 0
    %v1264 = vsel %vm235, %v1222, 0
    %v1267 = vsel %vm235, %v1223, 0
    %1269 = vmatprep.subr.bf16.mxu0 %v1197
    %1270 = vmatpush1.bf16.msra.mxu0 %v1196
    %1271 = vmatprep.subr.bf16.mxu0 %v1204
    %1272 = vmatpush1.bf16.msra.mxu0 %v1203
    %1273 = vmatprep.subr.bf16.mxu0 %v1211
    %1274 = vmatpush1.bf16.msra.mxu0 %v1210
    %1275 = vmatprep.subr.bf16.mxu0 %v1252
    %1276 = vmatpush1.bf16.msra.mxu0 %v1249
    %1277 = vmatprep.subr.bf16.mxu0 0
    %1278 = vmatpush1.bf16.msra.mxu0 0
    %1279 = vmatprep.subr.bf16.mxu0 0
    %1280 = vmatpush1.bf16.msra.mxu0 0
    %1281 = vmatprep.subr.bf16.mxu0 0
    %1282 = vmatpush1.bf16.msra.mxu0 0
    %1283 = vmatprep.subr.bf16.mxu0 0
    %1284 = vmatpush1.bf16.msra.mxu0 0
    %1285 = vmatprep.subr.bf16.mxu0 0
    %1286 = vmatpush1.bf16.msra.mxu0 0
    %1287 = vmatprep.subr.bf16.mxu0 0
    %1288 = vmatpush1.bf16.msra.mxu0 0
    %1289 = vmatprep.subr.bf16.mxu0 0
    %1290 = vmatpush1.bf16.msra.mxu0 0
    %1291 = vmatprep.subr.bf16.mxu0 0
    %1292 = vmatpush1.bf16.msra.mxu0 0
    %1293 = vmatprep.subr.bf16.mxu0 0
    %1294 = vmatpush1.bf16.msra.mxu0 0
    %1295 = vmatprep.subr.bf16.mxu0 0
    %1296 = vmatpush1.bf16.msra.mxu0 0
    %1297 = vmatprep.subr.bf16.mxu0 0
    %1298 = vmatpush1.bf16.msra.mxu0 0
    %1299 = vmatprep.subr.bf16.mxu0 0
    %1300 = vmatpush1.bf16.msra.mxu0 0
    %1301 = vmatprep.mubr.bf16.mxu0 0
    %1302 = vmatmul.mubr.bf16.gmra.mrb[0].mxu0 %v1246
    %v1303 = vpop.f32.mrb[0].mxu0
    %v1304 = vadd.f32 0.0, %v1303
    %v1305 = vpop.f32.mrb[0].mxu0
    %v1306 = vadd.f32 0.0, %v1305
    %v1307 = vpop.f32.mrb[0].mxu0
    %v1308 = vpop.f32.mrb[0].mxu0
    %1309 = vdwg.mxu0
    %1310 = vmatprep.subr.bf16.mxu0 %v1199
    %1311 = vmatpush1.bf16.msra.mxu0 %v1198
    %1312 = vmatprep.subr.bf16.mxu0 %v1206
    %1313 = vmatpush1.bf16.msra.mxu0 %v1205
    %1314 = vmatprep.subr.bf16.mxu0 %v1213
    %1315 = vmatpush1.bf16.msra.mxu0 %v1212
    %1316 = vmatprep.subr.bf16.mxu0 %v1258
    %1317 = vmatpush1.bf16.msra.mxu0 %v1255
    %1318 = vmatprep.subr.bf16.mxu0 0
    %1319 = vmatpush1.bf16.msra.mxu0 0
    %1320 = vmatprep.subr.bf16.mxu0 0
    %1321 = vmatpush1.bf16.msra.mxu0 0
    %1322 = vmatprep.subr.bf16.mxu0 0
    %1323 = vmatpush1.bf16.msra.mxu0 0
    %1324 = vmatprep.subr.bf16.mxu0 0
    %1325 = vmatpush1.bf16.msra.mxu0 0
    %1326 = vmatprep.subr.bf16.mxu0 0
    %1327 = vmatpush1.bf16.msra.mxu0 0
    %1328 = vmatprep.subr.bf16.mxu0 0
    %1329 = vmatpush1.bf16.msra.mxu0 0
    %1330 = vmatprep.subr.bf16.mxu0 0
    %1331 = vmatpush1.bf16.msra.mxu0 0
    %1332 = vmatprep.subr.bf16.mxu0 0
    %1333 = vmatpush1.bf16.msra.mxu0 0
    %1334 = vmatprep.subr.bf16.mxu0 0
    %1335 = vmatpush1.bf16.msra.mxu0 0
    %1336 = vmatprep.subr.bf16.mxu0 0
    %1337 = vmatpush1.bf16.msra.mxu0 0
    %1338 = vmatprep.subr.bf16.mxu0 0
    %1339 = vmatpush1.bf16.msra.mxu0 0
    %1340 = vmatprep.subr.bf16.mxu0 0
    %1341 = vmatpush1.bf16.msra.mxu0 0
    %1342 = vmatprep.mubr.bf16.mxu0 0
    %1343 = vmatmul.mubr.bf16.gmra.mrb[0].mxu0 %v1246
    %v1344 = vpop.f32.mrb[0].mxu0
    %v1345 = vadd.f32 0.0, %v1344
    %v1346 = vpop.f32.mrb[0].mxu0
    %v1347 = vadd.f32 0.0, %v1346
    %v1348 = vpop.f32.mrb[0].mxu0
    %v1349 = vpop.f32.mrb[0].mxu0
    %1350 = vdwg.mxu0
    %1351 = vmatprep.subr.bf16.mxu0 %v1201
    %1352 = vmatpush1.bf16.msra.mxu0 %v1200
    %1353 = vmatprep.subr.bf16.mxu0 %v1208
    %1354 = vmatpush1.bf16.msra.mxu0 %v1207
    %1355 = vmatprep.subr.bf16.mxu0 %v1215
    %1356 = vmatpush1.bf16.msra.mxu0 %v1214
    %1357 = vmatprep.subr.bf16.mxu0 %v1264
    %1358 = vmatpush1.bf16.msra.mxu0 %v1261
    %1359 = vmatprep.subr.bf16.mxu0 0
    %1360 = vmatpush1.bf16.msra.mxu0 0
    %1361 = vmatprep.subr.bf16.mxu0 0
    %1362 = vmatpush1.bf16.msra.mxu0 0
    %1363 = vmatprep.subr.bf16.mxu0 0
    %1364 = vmatpush1.bf16.msra.mxu0 0
    %1365 = vmatprep.subr.bf16.mxu0 0
    %1366 = vmatpush1.bf16.msra.mxu0 0
    %1367 = vmatprep.subr.bf16.mxu0 0
    %1368 = vmatpush1.bf16.msra.mxu0 0
    %1369 = vmatprep.subr.bf16.mxu0 0
    %1370 = vmatpush1.bf16.msra.mxu0 0
    %1371 = vmatprep.subr.bf16.mxu0 0
    %1372 = vmatpush1.bf16.msra.mxu0 0
    %1373 = vmatprep.subr.bf16.mxu0 0
    %1374 = vmatpush1.bf16.msra.mxu0 0
    %1375 = vmatprep.subr.bf16.mxu0 0
    %1376 = vmatpush1.bf16.msra.mxu0 0
    %1377 = vmatprep.subr.bf16.mxu0 0
    %1378 = vmatpush1.bf16.msra.mxu0 0
    %1379 = vmatprep.subr.bf16.mxu0 0
    %1380 = vmatpush1.bf16.msra.mxu0 0
    %1381 = vmatprep.subr.bf16.mxu0 0
    %1382 = vmatpush1.bf16.msra.mxu0 0
    %1383 = vmatprep.mubr.bf16.mxu0 0
    %1384 = vmatmul.mubr.bf16.gmra.mrb[0].mxu0 %v1246
    %v1385 = vpop.f32.mrb[0].mxu0
    %v1386 = vadd.f32 0.0, %v1385
    %v1387 = vpop.f32.mrb[0].mxu0
    %v1388 = vadd.f32 0.0, %v1387
    %v1389 = vpop.f32.mrb[0].mxu0
    %v1390 = vpop.f32.mrb[0].mxu0
    %1391 = vdwg.mxu0
    %1392 = vmatprep.subr.bf16.mxu0 0
    %1393 = vmatpush1.bf16.msra.mxu0 %v1202
    %1394 = vmatprep.subr.bf16.mxu0 0
    %1395 = vmatpush1.bf16.msra.mxu0 %v1209
    %1396 = vmatprep.subr.bf16.mxu0 0
    %1397 = vmatpush1.bf16.msra.mxu0 %v1216
    %1398 = vmatprep.subr.bf16.mxu0 0
    %1399 = vmatpush1.bf16.msra.mxu0 %v1267
    %1400 = vmatprep.subr.bf16.mxu0 0
    %1401 = vmatpush1.bf16.msra.mxu0 0
    %1402 = vmatprep.subr.bf16.mxu0 0
    %1403 = vmatpush1.bf16.msra.mxu0 0
    %1404 = vmatprep.subr.bf16.mxu0 0
    %1405 = vmatpush1.bf16.msra.mxu0 0
    %1406 = vmatprep.subr.bf16.mxu0 0
    %1407 = vmatpush1.bf16.msra.mxu0 0
    %1408 = vmatprep.subr.bf16.mxu0 0
    %1409 = vmatpush1.bf16.msra.mxu0 0
    %1410 = vmatprep.subr.bf16.mxu0 0
    %1411 = vmatpush1.bf16.msra.mxu0 0
    %1412 = vmatprep.subr.bf16.mxu0 0
    %1413 = vmatpush1.bf16.msra.mxu0 0
    %1414 = vmatprep.subr.bf16.mxu0 0
    %1415 = vmatpush1.bf16.msra.mxu0 0
    %1416 = vmatprep.subr.bf16.mxu0 0
    %1417 = vmatpush1.bf16.msra.mxu0 0
    %1418 = vmatprep.subr.bf16.mxu0 0
    %1419 = vmatpush1.bf16.msra.mxu0 0
    %1420 = vmatprep.subr.bf16.mxu0 0
    %1421 = vmatpush1.bf16.msra.mxu0 0
    %1422 = vmatprep.subr.bf16.mxu0 0
    %1423 = vmatpush1.bf16.msra.mxu0 0
    %1424 = vmatprep.mubr.bf16.mxu0 0
    %1425 = vmatmul.mubr.bf16.gmra.mrb[0].mxu0 %v1246
    %v1426 = vpop.f32.mrb[0].mxu0
    %v1427 = vadd.f32 0.0, %v1426
    %v1428 = vpop.f32.mrb[0].mxu0
    %v1429 = vpop.f32.mrb[0].mxu0
    %v1430 = vpop.f32.mrb[0].mxu0
    %1431 = vdwg.mxu0
    %v1432 = vadd.f32 %v1079, %v1304
    %v1433 = vadd.f32 %v1080, %v1306
    %v1434 = vadd.f32 %v1081, %v1345
    %v1435 = vadd.f32 %v1082, %v1347
    %v1436 = vadd.f32 %v1083, %v1386
    %v1437 = vadd.f32 %v1084, %v1388
    %v1438 = vadd.f32 %v1085, %v1427
    %1439 = vst [vmem:[#allocation7] sm:$0xff] %v1432
    %1440 = vst [vmem:[#allocation7 + $0x8] sm:$0xff] %v1433
    %1441 = vst [vmem:[#allocation7 + $0x10] sm:$0xff] %v1434
    %1442 = vst [vmem:[#allocation7 + $0x18] sm:$0xff] %v1435
    %1443 = vst [vmem:[#allocation7 + $0x20] sm:$0xff] %v1436
    %1444 = vst [vmem:[#allocation7 + $0x28] sm:$0xff] %v1437
    %1445 = vst [vmem:[#allocation7 + $0x30] sm:$0xff] %v1438
    // Predicated region
    $region18: #{tpu_custom_call.1} parent=1 // pred_check
      _
    $region19: #{tpu_custom_call.1} parent=1 // pred_check_branch
      %1447 = sbr.rel (0) target = $region21
    $region20: #{tpu_custom_call.1} parent=1 // pred_region
      %s1449 = ssub.s32 896, 896
      %1450 = vsyncadd [#allocation4], %s1449
      %s1452 = sshll.u32 [#allocation7], 4
      %s1453 = int_to_ptr.vmem [resolvable:$true] %s1452
      %1455 = dma.vmem_to_hbm [thread:$0]  %s1453, 896, %s2, [#allocation4]
    $region21: #{tpu_custom_call.1} parent=1 // pred_fallthru
      _
    // Predicated region
    $region22: #{tpu_custom_call.1} parent=1 // pred_check
      _
    $region23: #{tpu_custom_call.1} parent=1 // pred_check_branch
      %1457 = sbr.rel (0) target = $region25
    $region24: #{tpu_custom_call.1} parent=1 // pred_region
      %1458 = dma.done [#allocation4], 896
    $region25: #{tpu_custom_call.1} parent=1 // pred_fallthru
      _
    %1459 = vsyncpa [#allocation3], 1
    %1460 = vsyncpa [#allocation6], 1
    %1461 = vsyncpa [#allocation4], 1

</llo_original>
